<compile_context>
chip_gen: v6e
topology: v6e:2x2x1
jax: 0.10.0
libtpu: 0.0.40
codegen_flags: <defaults>
</compile_context>

<pallas_src>
import functools

import jax
import jax.numpy as jnp
from jax.experimental import pallas as pl
from jax.experimental.pallas import tpu as pltpu


def _round_up(x, m):
    return (x + m - 1) // m * m


def _dmm_kernel(x_ref, w_ref, m_ref, o_ref, *, mask_num):
    # x_ref: (C_in_pad, T)                    current batch's features, this HW tile
    # w_ref: (mask_num, C_out_pad, C_in_pad)  resident filter banks (batch squeezed)
    # m_ref: (mask_num, T)                    region mask weights for this tile (f32)
    # o_ref: (C_out_pad, T)
    x = x_ref[...]
    m = m_ref[...]
    acc = None
    # Static unroll over regions: one MXU matmul per region, mask applied on the
    # (small) f32 output, accumulated in f32.  No K x T staging buffer.
    for r in range(mask_num):
        pr = jnp.dot(w_ref[r], x, preferred_element_type=jnp.float32)   # (C_out_pad, T)
        pr = m[r:r + 1, :] * pr                                          # f32 mask scale
        acc = pr if acc is None else acc + pr
    o_ref[...] = acc.astype(o_ref.dtype)


def _vmem_budgets():
    """Generation-aware (tile_budget, vmem_limit) in bytes."""
    try:
        cap = int(pltpu.get_tpu_info().vmem_capacity_bytes)
    except Exception:
        cap = 64 * 1024 * 1024                     # conservative fallback (v7x-sized)
    cap = max(cap, 32 * 1024 * 1024)
    vmem_limit = min(int(cap * 0.85), cap - 4 * 1024 * 1024)
    tile_budget = int(cap * 0.40)
    return tile_budget, vmem_limit


def _choose_tile_hw(hw_pad, c_in_pad, c_out_pad, mask_num, in_bytes, out_bytes,
                    budget, force_split):
    """Largest 128-multiple divisor of hw_pad whose VMEM footprint fits `budget`."""
    q = hw_pad // 128

    def footprint(t):
        return (2 * c_in_pad * t * in_bytes                     # x double buffer
                + 2 * mask_num * t * 4                          # mask double buffer (f32)
                + 2 * c_out_pad * t * out_bytes                 # output double buffer
                + 2 * c_out_pad * t * 4                         # f32 acc + matmul temp
                + 2 * mask_num * c_out_pad * c_in_pad * in_bytes)  # resident weights (db)

    tile = 128
    for d in range(q, 0, -1):
        if q % d == 0 and footprint(d * 128) <= budget:
            tile = d * 128
            break
    if force_split and tile == hw_pad and q >= 2:
        # Guarantee >= 2 grid steps (v7x has 2 TensorCores per chip).
        for d in range(q // 2, 0, -1):
            if q % d == 0:
                tile = d * 128
                break
    return tile


@functools.partial(jax.jit, static_argnames=("use_alpha", "beta"))
def deformable_matmul3(mat0, mat1, mask, Alpha=None, use_alpha=False, beta=1.0):
    # Alpha / use_alpha / beta are backward-only; unused in the forward pass.
    B, C_in, H, W = mat0.shape
    if mat1.ndim == 3:
        mat1 = mat1[None]                          # (1, C_out, C_in, num)
    B_W, C_out, _, num = mat1.shape
    if mask.ndim == 2:
        mask = mask[None]                          # (1, H, W)
    mask_num = mask.shape[0]
    assert mask_num <= num, "mask_num must not exceed the number of filter banks"

    in_dtype = mat0.dtype
    in_bytes = jnp.dtype(in_dtype).itemsize
    out_bytes = in_bytes
    HW = H * W

    # --- dtype-aware padding for clean TPU layout ---
    sublane = max(8, 32 // in_bytes)               # 8 f32, 16 bf16, 32 int8
    C_in_pad = _round_up(C_in, sublane)
    C_out_pad = _round_up(C_out, sublane)
    HW_pad = _round_up(HW, 128)                    # pad only to the lane width

    tile_budget, vmem_limit = _vmem_budgets()
    TILE = _choose_tile_hw(HW_pad, C_in_pad, C_out_pad, mask_num, in_bytes,
                           out_bytes, tile_budget, force_split=(B == 1))
    n_tiles = HW_pad // TILE

    # Features: (B, C_in_pad, HW_pad)
    x = mat0.reshape(B, C_in, HW)
    if C_in_pad != C_in or HW_pad != HW:
        x = jnp.pad(x, ((0, 0), (0, C_in_pad - C_in), (0, HW_pad - HW)))

    # Mask kept in f32 end-to-end (no downcast) to preserve soft-mask precision.
    m = mask.astype(jnp.float32).reshape(mask_num, HW)
    if HW_pad != HW:
        m = jnp.pad(m, ((0, 0), (0, HW_pad - HW)))

    # Weights: (B_W, mask_num, C_out_pad, C_in_pad); only the masked banks contribute.
    w = mat1[..., :mask_num]                       # (B_W, C_out, C_in, mask_num)
    w = jnp.transpose(w, (0, 3, 1, 2))             # (B_W, mask_num, C_out, C_in)
    w = jnp.pad(w, ((0, 0), (0, 0), (0, C_out_pad - C_out), (0, C_in_pad - C_in)))
    w = w.astype(in_dtype)

    kernel = functools.partial(_dmm_kernel, mask_num=mask_num)

    if B_W == 1:
        # Shared weights: tile-outer / batch-inner so the mask tile (which depends
        # only on the tile index) stays VMEM-resident across the batch axis.
        grid = (n_tiles, B)
        x_spec = pl.BlockSpec((None, C_in_pad, TILE), lambda j, b: (b, 0, j))
        w_spec = pl.BlockSpec((None, mask_num, C_out_pad, C_in_pad),
                              lambda j, b: (0, 0, 0, 0))
        m_spec = pl.BlockSpec((mask_num, TILE), lambda j, b: (0, j))
        o_spec = pl.BlockSpec((None, C_out_pad, TILE), lambda j, b: (b, 0, j))
    else:
        # Per-batch weights: batch-outer so the weight bank is not re-DMA'd per tile.
        grid = (B, n_tiles)
        x_spec = pl.BlockSpec((None, C_in_pad, TILE), lambda b, j: (b, 0, j))
        w_spec = pl.BlockSpec((None, mask_num, C_out_pad, C_in_pad),
                              lambda b, j: (b, 0, 0, 0))
        m_spec = pl.BlockSpec((mask_num, TILE), lambda b, j: (0, j))
        o_spec = pl.BlockSpec((None, C_out_pad, TILE), lambda b, j: (b, 0, j))

    grid_spec = pltpu.PrefetchScalarGridSpec(
        num_scalar_prefetch=0,
        grid=grid,
        in_specs=[x_spec, w_spec, m_spec],
        out_specs=o_spec,
    )

    cost = pl.CostEstimate(
        flops=2 * B * mask_num * C_out * C_in * HW,
        transcendentals=0,
        bytes_accessed=(x.size * in_bytes + w.size * in_bytes
                        + m.size * 4 + B * C_out_pad * HW_pad * out_bytes),
    )

    out = pl.pallas_call(
        kernel,
        out_shape=jax.ShapeDtypeStruct((B, C_out_pad, HW_pad), in_dtype),
        grid_spec=grid_spec,
        compiler_params=pltpu.CompilerParams(
            dimension_semantics=("parallel", "parallel"),
            vmem_limit_bytes=vmem_limit),
        cost_estimate=cost,
    )(x, w, m)

    if C_out_pad != C_out or HW_pad != HW:
        out = out[:, :C_out, :HW]
    return out.reshape(B, C_out, H, W)


def _reference(mat0, mat1, mask):
    # Pure-JAX reference for the same semantics.
    if mat1.ndim == 3:
        mat1 = mat1[None]
    if mask.ndim == 2:
        mask = mask[None]
    B = mat0.shape[0]
    batch_W = mat1.shape[0]
    bw = jnp.arange(B) if batch_W == B else jnp.zeros((B,), jnp.int32)
    w = mat1[bw]                                            # (B, C_out, C_in, num)
    mask_num = mask.shape[0]
    w = w[..., :mask_num]                                   # only masked banks used
    return jnp.einsum("mhw,boim,bihw->bohw",
                      mask.astype(jnp.float32), w.astype(jnp.float32),
                      mat0.astype(jnp.float32)).astype(mat0.dtype)


if __name__ == "__main__":
    # Small shapes consistent with the module.
    B, C_in, C_out, H, W = 2, 8, 8, 16, 16      # HW = 256 (lane-aligned)
    num = 4                                     # number of region filter banks
    mask_num = num

    key = jax.random.PRNGKey(0)
    k0, k1, k2, k3 = jax.random.split(key, 4)

    mat0 = jax.random.normal(k0, (B, C_in, H, W), dtype=jnp.float32)
    # mat1 in 3D form (C_out, C_in, num) -> shared filters across the batch.
    mat1 = jax.random.normal(k1, (C_out, C_in, num), dtype=jnp.float32) * 0.1
    # Hard one-hot region mask (mask_num, H, W), as DRConv produces via argmax.
    region = jax.random.randint(k2, (H, W), 0, mask_num)
    mask = (jax.nn.one_hot(region, mask_num, dtype=jnp.float32)
            .transpose(2, 0, 1))                # (mask_num, H, W)
    Alpha = jax.random.normal(k3, (mask_num,), dtype=jnp.float32)  # backward-only

    out = deformable_matmul3(mat0, mat1, mask, Alpha, use_alpha=False, beta=1.0)
    out = jax.block_until_ready(out)

    ref = _reference(mat0, mat1, mask)
    assert out.shape == (B, C_out, H, W)
    assert jnp.allclose(out, ref, atol=1e-3, rtol=1e-3), "mismatch vs reference"

    # Also exercise the per-batch-weights (B_W == B) path.
    mat1_b = jax.random.normal(k3, (B, C_out, C_in, num), dtype=jnp.float32) * 0.1
    out_b = jax.block_until_ready(
        deformable_matmul3(mat0, mat1_b, mask, Alpha, use_alpha=False, beta=1.0))
    ref_b = _reference(mat0, mat1_b, mask)
    assert jnp.allclose(out_b, ref_b, atol=1e-3, rtol=1e-3), "mismatch vs reference (B_W=B)"

    print("KERNEL_OK")
</pallas_src>

<mosaic_0001>
module attributes {stable_mosaic.version = 11 : i64} {
  func.func @_dmm_kernel(%arg0: i32, %arg1: i32, %arg2: memref<1x8x256xf32, #tpu.memory_space<vmem>>, %arg3: memref<1x4x8x8xf32, #tpu.memory_space<vmem>>, %arg4: memref<4x256xf32, #tpu.memory_space<vmem>>, %arg5: memref<1x8x256xf32, #tpu.memory_space<vmem>>) attributes {dimension_semantics = [#tpu.dimension_semantics<parallel>, #tpu.dimension_semantics<parallel>], iteration_bounds = array<i64: 1, 2>, scalar_prefetch = 0 : i64, scratch_operands = 0 : i64, tpu.core_type = #tpu.core_type<tc>, window_params = [{transform_indices = @transform_0, window_bounds = array<i64: 1, 8, 256>}, {pipeline_mode = #tpu.pipeline_mode<synchronous>, transform_indices = @transform_1, window_bounds = array<i64: 1, 4, 8, 8>}, {transform_indices = @transform_2, window_bounds = array<i64: 4, 256>}, {transform_indices = @transform_3, window_bounds = array<i64: 1, 8, 256>}]} {
    %c0 = arith.constant 0 : index
    %c0_0 = arith.constant 0 : index
    %c0_1 = arith.constant 0 : index
    %0 = vector.load %arg2[%c0, %c0_0, %c0_1] : memref<1x8x256xf32, #tpu.memory_space<vmem>>, vector<1x8x256xf32>
    %1 = vector.shape_cast %0 : vector<1x8x256xf32> to vector<8x256xf32>
    %c0_2 = arith.constant 0 : index
    %c0_3 = arith.constant 0 : index
    %2 = vector.load %arg4[%c0_2, %c0_3] : memref<4x256xf32, #tpu.memory_space<vmem>>, vector<4x256xf32>
    %c0_4 = arith.constant 0 : index
    %c0_5 = arith.constant 0 : index
    %c0_6 = arith.constant 0 : index
    %c0_7 = arith.constant 0 : index
    %3 = vector.load %arg3[%c0_4, %c0_5, %c0_6, %c0_7] : memref<1x4x8x8xf32, #tpu.memory_space<vmem>>, vector<1x1x8x8xf32>
    %4 = vector.shape_cast %3 : vector<1x1x8x8xf32> to vector<8x8xf32>
    %cst = arith.constant dense<0.000000e+00> : vector<8x256xf32>
    %5 = tpu.matmul %4, %1, %cst {dimension_numbers = #tpu.dot_dimension_numbers<[1], [0], [0], [1], [0, 0, 1, 1], [], []>} : vector<8x8xf32>, vector<8x256xf32>, vector<8x256xf32> -> vector<8x256xf32>
    %6 = vector.extract_strided_slice %2 {offsets = [0, 0], sizes = [1, 256], strides = [1, 1]} : vector<4x256xf32> to vector<1x256xf32>
    %7 = vector.broadcast %6 : vector<1x256xf32> to vector<8x256xf32>
    %8 = arith.mulf %7, %5 : vector<8x256xf32>
    %c0_8 = arith.constant 0 : index
    %c1 = arith.constant 1 : index
    %c0_9 = arith.constant 0 : index
    %c0_10 = arith.constant 0 : index
    %9 = vector.load %arg3[%c0_8, %c1, %c0_9, %c0_10] : memref<1x4x8x8xf32, #tpu.memory_space<vmem>>, vector<1x1x8x8xf32>
    %10 = vector.shape_cast %9 : vector<1x1x8x8xf32> to vector<8x8xf32>
    %cst_11 = arith.constant dense<0.000000e+00> : vector<8x256xf32>
    %11 = tpu.matmul %10, %1, %cst_11 {dimension_numbers = #tpu.dot_dimension_numbers<[1], [0], [0], [1], [0, 0, 1, 1], [], []>} : vector<8x8xf32>, vector<8x256xf32>, vector<8x256xf32> -> vector<8x256xf32>
    %12 = vector.extract_strided_slice %2 {offsets = [1, 0], sizes = [1, 256], strides = [1, 1]} : vector<4x256xf32> to vector<1x256xf32>
    %13 = vector.broadcast %12 : vector<1x256xf32> to vector<8x256xf32>
    %14 = arith.mulf %13, %11 : vector<8x256xf32>
    %15 = arith.addf %8, %14 : vector<8x256xf32>
    %c0_12 = arith.constant 0 : index
    %c2 = arith.constant 2 : index
    %c0_13 = arith.constant 0 : index
    %c0_14 = arith.constant 0 : index
    %16 = vector.load %arg3[%c0_12, %c2, %c0_13, %c0_14] : memref<1x4x8x8xf32, #tpu.memory_space<vmem>>, vector<1x1x8x8xf32>
    %17 = vector.shape_cast %16 : vector<1x1x8x8xf32> to vector<8x8xf32>
    %cst_15 = arith.constant dense<0.000000e+00> : vector<8x256xf32>
    %18 = tpu.matmul %17, %1, %cst_15 {dimension_numbers = #tpu.dot_dimension_numbers<[1], [0], [0], [1], [0, 0, 1, 1], [], []>} : vector<8x8xf32>, vector<8x256xf32>, vector<8x256xf32> -> vector<8x256xf32>
    %19 = vector.extract_strided_slice %2 {offsets = [2, 0], sizes = [1, 256], strides = [1, 1]} : vector<4x256xf32> to vector<1x256xf32>
    %20 = vector.broadcast %19 : vector<1x256xf32> to vector<8x256xf32>
    %21 = arith.mulf %20, %18 : vector<8x256xf32>
    %22 = arith.addf %15, %21 : vector<8x256xf32>
    %c0_16 = arith.constant 0 : index
    %c3 = arith.constant 3 : index
    %c0_17 = arith.constant 0 : index
    %c0_18 = arith.constant 0 : index
    %23 = vector.load %arg3[%c0_16, %c3, %c0_17, %c0_18] : memref<1x4x8x8xf32, #tpu.memory_space<vmem>>, vector<1x1x8x8xf32>
    %24 = vector.shape_cast %23 : vector<1x1x8x8xf32> to vector<8x8xf32>
    %cst_19 = arith.constant dense<0.000000e+00> : vector<8x256xf32>
    %25 = tpu.matmul %24, %1, %cst_19 {dimension_numbers = #tpu.dot_dimension_numbers<[1], [0], [0], [1], [0, 0, 1, 1], [], []>} : vector<8x8xf32>, vector<8x256xf32>, vector<8x256xf32> -> vector<8x256xf32>
    %26 = vector.extract_strided_slice %2 {offsets = [3, 0], sizes = [1, 256], strides = [1, 1]} : vector<4x256xf32> to vector<1x256xf32>
    %27 = vector.broadcast %26 : vector<1x256xf32> to vector<8x256xf32>
    %28 = arith.mulf %27, %25 : vector<8x256xf32>
    %29 = arith.addf %22, %28 : vector<8x256xf32>
    %c0_20 = arith.constant 0 : index
    %c0_21 = arith.constant 0 : index
    %c0_22 = arith.constant 0 : index
    %30 = vector.load %arg5[%c0_20, %c0_21, %c0_22] : memref<1x8x256xf32, #tpu.memory_space<vmem>>, vector<1x8x256xf32>
    %31 = vector.shape_cast %30 : vector<1x8x256xf32> to vector<8x256xf32>
    %32 = vector.shape_cast %29 : vector<8x256xf32> to vector<1x8x256xf32>
    tpu.vector_store %arg5[%c0_20, %c0_21, %c0_22], %32 {strides = array<i32>} : memref<1x8x256xf32, #tpu.memory_space<vmem>>, vector<1x8x256xf32>,
    return
  }
  func.func @transform_0(%arg0: i32, %arg1: i32) -> (i32, i32, i32) {
    %c0_i32 = arith.constant 0 : i32
    %c0_i32_0 = arith.constant 0 : i32
    return %arg1, %c0_i32, %arg0 : i32, i32, i32
  }
  func.func @transform_1(%arg0: i32, %arg1: i32) -> (i32, i32, i32, i32) {
    %c0_i32 = arith.constant 0 : i32
    %c0_i32_0 = arith.constant 0 : i32
    %c0_i32_1 = arith.constant 0 : i32
    %c0_i32_2 = arith.constant 0 : i32
    %c0_i32_3 = arith.constant 0 : i32
    return %c0_i32, %c0_i32_0, %c0_i32_1, %c0_i32_2 : i32, i32, i32, i32
  }
  func.func @transform_2(%arg0: i32, %arg1: i32) -> (i32, i32) {
    %c0_i32 = arith.constant 0 : i32
    %c0_i32_0 = arith.constant 0 : i32
    return %c0_i32, %arg0 : i32, i32
  }
  func.func @transform_3(%arg0: i32, %arg1: i32) -> (i32, i32, i32) {
    %c0_i32 = arith.constant 0 : i32
    %c0_i32_0 = arith.constant 0 : i32
    return %arg1, %c0_i32, %arg0 : i32, i32, i32
  }
}

</mosaic_0001>

<llo_original>
// kernel: deformable_matmul3.1
$region0: #{deformable_matmul3.1}
  #allocation0 [shape = 'u32[]', space=smem, size = 0x4, offset = 0x4, fixed_abs, tag = 'smem constant byte address 0x4 - core index']
  #allocation1 [shape = 'u32[144,128]{1,0:T(1,128)}', space=vmem, size = 0x12000, scoped, tag = 'internal scratch']
  %s0 = inlined_call_operand.vmem [shape: f32[2,8,256], index: 0, kind: input, shape index: {}]
  %s1 = inlined_call_operand.vmem [shape: f32[1,4,8,8], index: 1, kind: input, shape index: {}]
  %s2 = inlined_call_operand.vmem [shape: f32[4,256], index: 2, kind: input, shape index: {}]
  %s3 = inlined_call_operand.vmem [shape: f32[2,8,256], index: 3, kind: output, shape index: {}]
  %s4 = sld [smem:[#allocation0]]
  $region45: #{deformable_matmul3.1} parent=0
    _
  %s6 = ssub.s32 1, %s4
  %s7 = scalar_select 0, %s6, %s4
  loop: start=0, step=1, limit=4
  $region2: #{deformable_matmul3.1} parent=0 // loop_pre_header
    _
  $region3: #{deformable_matmul3.1} parent=0 // loop_header
    %s9 = sphi 0, %s13
    %p10 = scmp.ge.s32.totalorder %s9, 4
    %s16 = sphi 0, %s28
    %s17 = sphi 0, %s24
    %s18 = sphi 0, %s16
    %s19 = sphi 0, %s17
    %s20 = sphi 0, %s18
    %s21 = sphi 0, %s19
    %s33 = sphi 0, %s35
    %s36 = sphi 0, %s33
    %s37 = sphi 0, %s36
    %s53 = sphi 0, %s37
    %s57 = sphi 0, %s57
    %s59 = sphi 0, %s57
    %s60 = sphi 0, %s59
    %s74 = sphi 0, %s60
    %s80 = sphi 0, %s82
    %s83 = sphi 0, %s80
    %s84 = sphi 0, %s83
    %s100 = sphi 0, %s84
    %s108 = sphi 0, %s110
    %s111 = sphi 0, %s108
    %s112 = sphi 0, %s111
    %s128 = sphi 0, %s112
  $region4: #{deformable_matmul3.1} parent=0 // loop_header_branch
    %12 = sbr.rel (%p10) target = $region8
  $region5: #{deformable_matmul3.1} parent=0 // loop_body
    %s14 = ssub.s32 %s9, 1
    %s15 = ssub.s32 %s9, 2
    %s22 = sadd.s32 1, %s17
    %p23 = scmp.ge.s32.totalorder %s22, 2
    %s24 = scalar_select %p23, 0, %s22
    %s25 = sadd.s32 1, %s16
    %s26 = scalar_select %p23, %s25, %s16
    %p27 = scmp.ge.s32.totalorder %s26, 1
    %s28 = scalar_select %p27, 0, %s26
    %s29 = ssub.s32 %s17, %s24
    %s30 = ssub.s32 %s16, %s28
    %s31 = sor.u32 %s29, %s30
    %p32 = scmp.eq.s32.totalorder %s31, 0
    %s34 = sadd.s32 %s33, 1
    %s35 = scalar_select %p32, %s33, %s34
    %p38 = pneg %p32
    %p39 = scmp.eq.s32.totalorder %s9, 1
    %p40 = por %p38, %p39
    %p41 = scmp.ne.s32.totalorder %s33, %s36
    %p42 = scmp.eq.s32.totalorder %s9, 0
    %p43 = por %p41, %p42
    %p44 = scmp.ne.s32.totalorder %s33, %s36
    %p45 = scmp.eq.s32.totalorder %s14, 1
    %p46 = por %p44, %p45
    %p47 = scmp.ne.s32.totalorder %s36, %s37
    %p48 = scmp.eq.s32.totalorder %s14, 0
    %p49 = por %p47, %p48
    %p50 = scmp.ne.s32.totalorder %s36, %s37
    %p51 = scmp.eq.s32.totalorder %s15, 1
    %p52 = por %p50, %p51
    %p54 = scmp.ne.s32.totalorder %s37, %s53
    %p55 = scmp.eq.s32.totalorder %s15, 0
    %p56 = por %p54, %p55
    %s58 = sadd.s32 %s57, 1
    %p61 = scmp.eq.s32.totalorder %s9, 1
    %p62 = scmp.ne.s32.totalorder %s57, %s59
    %p63 = scmp.eq.s32.totalorder %s9, 0
    %p64 = por %p62, %p63
    %p65 = scmp.ne.s32.totalorder %s57, %s59
    %p66 = scmp.eq.s32.totalorder %s14, 1
    %p67 = por %p65, %p66
    %p68 = scmp.ne.s32.totalorder %s59, %s60
    %p69 = scmp.eq.s32.totalorder %s14, 0
    %p70 = por %p68, %p69
    %p71 = scmp.ne.s32.totalorder %s59, %s60
    %p72 = scmp.eq.s32.totalorder %s15, 1
    %p73 = por %p71, %p72
    %p75 = scmp.ne.s32.totalorder %s60, %s74
    %p76 = scmp.eq.s32.totalorder %s15, 0
    %p77 = por %p75, %p76
    %s78 = ssub.s32 %s16, %s28
    %p79 = scmp.eq.s32.totalorder %s78, 0
    %s81 = sadd.s32 %s80, 1
    %s82 = scalar_select %p79, %s80, %s81
    %p85 = pneg %p79
    %p86 = scmp.eq.s32.totalorder %s9, 1
    %p87 = por %p85, %p86
    %p88 = scmp.ne.s32.totalorder %s80, %s83
    %p89 = scmp.eq.s32.totalorder %s9, 0
    %p90 = por %p88, %p89
    %p91 = scmp.ne.s32.totalorder %s80, %s83
    %p92 = scmp.eq.s32.totalorder %s14, 1
    %p93 = por %p91, %p92
    %p94 = scmp.ne.s32.totalorder %s83, %s84
    %p95 = scmp.eq.s32.totalorder %s14, 0
    %p96 = por %p94, %p95
    %p97 = scmp.ne.s32.totalorder %s83, %s84
    %p98 = scmp.eq.s32.totalorder %s15, 1
    %p99 = por %p97, %p98
    %p101 = scmp.ne.s32.totalorder %s84, %s100
    %p102 = scmp.eq.s32.totalorder %s15, 0
    %p103 = por %p101, %p102
    %s104 = ssub.s32 %s17, %s24
    %s105 = ssub.s32 %s16, %s28
    %s106 = sor.u32 %s104, %s105
    %p107 = scmp.eq.s32.totalorder %s106, 0
    %s109 = sadd.s32 %s108, 1
    %s110 = scalar_select %p107, %s108, %s109
    %p113 = pneg %p107
    %p114 = scmp.eq.s32.totalorder %s9, 1
    %p115 = por %p113, %p114
    %p116 = scmp.ne.s32.totalorder %s108, %s111
    %p117 = scmp.eq.s32.totalorder %s9, 0
    %p118 = por %p116, %p117
    %p119 = scmp.ne.s32.totalorder %s108, %s111
    %p120 = scmp.eq.s32.totalorder %s14, 1
    %p121 = por %p119, %p120
    %p122 = scmp.ne.s32.totalorder %s111, %s112
    %p123 = scmp.eq.s32.totalorder %s14, 0
    %p124 = por %p122, %p123
    %p125 = scmp.ne.s32.totalorder %s111, %s112
    %p126 = scmp.eq.s32.totalorder %s15, 1
    %p127 = por %p125, %p126
    %p129 = scmp.ne.s32.totalorder %s112, %s128
    %p130 = scmp.eq.s32.totalorder %s15, 0
    %p131 = por %p129, %p130
    %p132 = scmp.le.s32.totalorder 1, %s9
    %p133 = scmp.lt.s32.totalorder %s9, 3
    %p134 = pnand %p132, %p133
    %p135 = pneg %p134
    // Predicated region
    $region9: #{deformable_matmul3.1} parent=5 // pred_check
      _
    $region10: #{deformable_matmul3.1} parent=5 // pred_check_branch
      %137 = sbr.rel (%p134) target = $region12
    $region11: #{deformable_matmul3.1} parent=5 // pred_region
      %s138 = ssub.s32 %s9, 1
      // Predicated region
      $region13: #{deformable_matmul3.1} parent=11 // pred_check
        %p139 = pneg %p70
      $region14: #{deformable_matmul3.1} parent=11 // pred_check_branch
        %141 = sbr.rel (%p139) target = $region16
      $region15: #{deformable_matmul3.1} parent=11 // pred_region
        _
      $region16: #{deformable_matmul3.1} parent=11 // pred_fallthru
        _
      // Predicated region
      $region17: #{deformable_matmul3.1} parent=11 // pred_check
        %p142 = pneg %p96
      $region18: #{deformable_matmul3.1} parent=11 // pred_check_branch
        %144 = sbr.rel (%p142) target = $region20
      $region19: #{deformable_matmul3.1} parent=11 // pred_region
        %s145 = smul.u32 2, %s18
        %p146 = scmp.lt.s32.totalorder %s145, 1
        %s147 = scalar_select %p146, %s145, 1
        %s148 = smul.addr %s147, 4
        %s149 = scalar_lea.vmem %s2, %s148
        %s150 = smul.u32 2, %s18
      $region20: #{deformable_matmul3.1} parent=11 // pred_fallthru
        _
    $region12: #{deformable_matmul3.1} parent=5 // pred_fallthru
      _
    %p151 = scmp.lt.s32.totalorder %s9, 2
    // Predicated region
    $region21: #{deformable_matmul3.1} parent=5 // pred_check
      %p152 = pneg %p151
    $region22: #{deformable_matmul3.1} parent=5 // pred_check_branch
      %154 = sbr.rel (%p152) target = $region24
    $region23: #{deformable_matmul3.1} parent=5 // pred_region
      // Predicated region
      $region25: #{deformable_matmul3.1} parent=23 // pred_check
        %p155 = pneg %p43
      $region26: #{deformable_matmul3.1} parent=23 // pred_check_branch
        %157 = sbr.rel (%p155) target = $region28
      $region27: #{deformable_matmul3.1} parent=23 // pred_region
        %s158 = smul.u32 2, %s16
        %p159 = scmp.lt.s32.totalorder %s17, 1
        %s160 = scalar_select %p159, %s17, 1
        %p161 = scmp.lt.s32.totalorder %s158, 1
        %s162 = scalar_select %p161, %s158, 1
        %s163 = smul.addr %s160, 2
        %s164 = sadd.s32 %s162, %s163
        %s165 = smul.addr %s164, 8
        %s166 = scalar_lea.vmem %s0, %s165
        %s167 = smul.u32 2, %s16
      $region28: #{deformable_matmul3.1} parent=23 // pred_fallthru
        _
    $region24: #{deformable_matmul3.1} parent=5 // pred_fallthru
      _
    %p168 = scmp.le.s32.totalorder 1, %s9
    %p169 = scmp.lt.s32.totalorder %s9, 3
    %p170 = pnand %p168, %p169
    %p171 = pneg %p170
    // Predicated region
    $region29: #{deformable_matmul3.1} parent=5 // pred_check
      _
    $region30: #{deformable_matmul3.1} parent=5 // pred_check_branch
      %173 = sbr.rel (%p170) target = $region32
    $region31: #{deformable_matmul3.1} parent=5 // pred_region
      %s174 = ssub.s32 %s9, 1
      %s175 = smul.u32 2, %s18
      %p176 = scmp.lt.s32.totalorder %s19, 1
      %s177 = scalar_select %p176, %s19, 1
      %p178 = scmp.lt.s32.totalorder %s175, 1
      %s179 = scalar_select %p178, %s175, 1
      %s180 = smul.addr %s177, 2
      %s181 = sadd.s32 %s179, %s180
      %s182 = smul.addr %s181, 8
      %s183 = scalar_lea.vmem %s0, %s182
      %p184 = pneg %p49
      %p185 = pneg %p46
      %p186 = pneg %p70
      %p187 = pneg %p67
      %s188 = smul.u32 2, %s18
      %p189 = scmp.lt.s32.totalorder %s188, 1
      %s190 = scalar_select %p189, %s188, 1
      %s191 = smul.addr %s190, 4
      %s192 = scalar_lea.vmem %s2, %s191
      %p193 = pneg %p96
      %p194 = pneg %p93
      %p195 = pneg %p124
      %p196 = pneg %p121
      %s197 = smul.u32 2, %s18
      %p198 = scmp.lt.s32.totalorder %s19, 1
      %s199 = scalar_select %p198, %s19, 1
      %p200 = scmp.lt.s32.totalorder %s197, 1
      %s201 = scalar_select %p200, %s197, 1
      %s202 = smul.addr %s199, 2
      %s203 = sadd.s32 %s201, %s202
      %s204 = smul.addr %s203, 8
      %s205 = scalar_lea.vmem %s3, %s204
      %s206 = smul.u32 2, %s18
      %p207 = scmp.lt.s32.totalorder %s19, 1
      %s208 = scalar_select %p207, %s19, 1
      %p209 = scmp.lt.s32.totalorder %s206, 1
      %s210 = scalar_select %p209, %s206, 1
      %s211 = smul.addr %s208, 2
      %s212 = sadd.s32 %s210, %s211
      %s213 = smul.addr %s212, 8
      %s214 = scalar_lea.vmem %s0, %s213
      %s215 = smul.u32 2, %s18
      %s216 = smul.u32 2, %s18
      %p217 = scmp.lt.s32.totalorder %s216, 1
      %s218 = scalar_select %p217, %s216, 1
      %s219 = smul.addr %s218, 4
      %s220 = scalar_lea.vmem %s2, %s219
      %s221 = smul.u32 2, %s18
      %s222 = smul.u32 2, %s18
      %p223 = scmp.lt.s32.totalorder %s19, 1
      %s224 = scalar_select %p223, %s19, 1
      %p225 = scmp.lt.s32.totalorder %s222, 1
      %s226 = scalar_select %p225, %s222, 1
      %s227 = smul.addr %s224, 2
      %s228 = sadd.s32 %s226, %s227
      %s229 = smul.addr %s228, 8
      %s230 = scalar_lea.vmem %s3, %s229
      %s231 = smul.u32 2, %s18
      %v232 = vld [vmem:[%s214] sm:$0xff]
      %v233 = vld [vmem:[%s214 + $0x8] sm:$0xff]
      %v234 = vld [vmem:[%s220] sm:$0xff]
      %v235 = vld [vmem:[%s1] sm:$0xff]
      %vm236 = vcmask 64512
      %v238 = vsel %vm236, %v235, 0
      %240 = vmatprep.subr.mxu0 0.0
      %241 = vmatpush1.msra.mxu0 0.0
      %242 = vmatprep.subr.mxu0 0.0
      %243 = vmatpush1.msra.mxu0 0.0
      %244 = vmatprep.subr.mxu0 0.0
      %245 = vmatpush1.msra.mxu0 0.0
      %246 = vmatprep.subr.mxu0 0.0
      %247 = vmatpush1.msra.mxu0 0.0
      %248 = vmatprep.subr.mxu0 0.0
      %249 = vmatpush1.msra.mxu0 0.0
      %250 = vmatprep.subr.mxu0 0.0
      %251 = vmatpush1.msra.mxu0 0.0
      %252 = vmatprep.subr.mxu0 0.0
      %253 = vmatpush1.msra.mxu0 0.0
      %254 = vmatprep.subr.mxu0 0.0
      %255 = vmatpush1.msra.mxu0 0.0
      %256 = vmatprep.subr.mxu0 0.0
      %257 = vmatpush1.msra.mxu0 0.0
      %258 = vmatprep.subr.mxu0 0.0
      %259 = vmatpush1.msra.mxu0 0.0
      %260 = vmatprep.subr.mxu0 0.0
      %261 = vmatpush1.msra.mxu0 0.0
      %262 = vmatprep.subr.mxu0 0.0
      %263 = vmatpush1.msra.mxu0 0.0
      %264 = vmatprep.subr.mxu0 0.0
      %265 = vmatpush1.msra.mxu0 0.0
      %266 = vmatprep.subr.mxu0 0.0
      %267 = vmatpush1.msra.mxu0 0.0
      %268 = vmatprep.subr.mxu0 0.0
      %269 = vmatpush1.msra.mxu0 0.0
      %270 = vmatprep.subr.mxu0 %v233
      %271 = vmatpush1.msra.mxu0 %v232
      %272 = vmatprep.subr.mxu0 0.0
      %273 = vmatpush2.msra.mxu0 0.0
      %274 = vmatprep.subr.mxu0 0.0
      %275 = vmatpush2.msra.mxu0 0.0
      %276 = vmatprep.subr.mxu0 0.0
      %277 = vmatpush2.msra.mxu0 0.0
      %278 = vmatprep.subr.mxu0 0.0
      %279 = vmatpush2.msra.mxu0 0.0
      %280 = vmatprep.subr.mxu0 0.0
      %281 = vmatpush2.msra.mxu0 0.0
      %282 = vmatprep.subr.mxu0 0.0
      %283 = vmatpush2.msra.mxu0 0.0
      %284 = vmatprep.subr.mxu0 0.0
      %285 = vmatpush2.msra.mxu0 0.0
      %286 = vmatprep.subr.mxu0 0.0
      %287 = vmatpush2.msra.mxu0 0.0
      %288 = vmatprep.subr.mxu0 0.0
      %289 = vmatpush2.msra.mxu0 0.0
      %290 = vmatprep.subr.mxu0 0.0
      %291 = vmatpush2.msra.mxu0 0.0
      %292 = vmatprep.subr.mxu0 0.0
      %293 = vmatpush2.msra.mxu0 0.0
      %294 = vmatprep.subr.mxu0 0.0
      %295 = vmatpush2.msra.mxu0 0.0
      %296 = vmatprep.subr.mxu0 0.0
      %297 = vmatpush2.msra.mxu0 0.0
      %298 = vmatprep.subr.mxu0 0.0
      %299 = vmatpush2.msra.mxu0 0.0
      %300 = vmatprep.subr.mxu0 0.0
      %301 = vmatpush2.msra.mxu0 0.0
      %302 = vmatprep.subr.mxu0 0.0
      %303 = vmatpush2.msra.mxu0 0.0
      %304 = vmatprep.mubr.f32.mxu0 0.0
      %305 = vmatmul.mubr.f32.gmra.mxu0 %v238
      %v306 = vpop.f32.mrf.mxu0
      %v307 = vadd.f32 0.0, %v306
      %v308 = vpop.f32.mrf.mxu0
      %v309 = vadd.f32 0.0, %v308
      %310 = vdwg.mxu0
      %v312 = vlaneseq
      %v313 = vshrl.u32 %v312, 7
      %v314 = vsub.s32 0, %v313
      %v315 = vrot.slane %v234, %v314
      %v316 = vlaneseq
      %v317 = vshrl.u32 %v316, 7
      %v318 = vsub.s32 4, %v317
      %v319 = vrot.slane %v234, %v318
      %v322 = vlaneseq
      %v323 = vshrl.u32 %v322, 7
      %v324 = vsub.s32 0, %v323
      %v325 = vrot.slane %v315, %v324
      %v326 = vlaneseq
      %v327 = vshrl.u32 %v326, 7
      %v328 = vsub.s32 0, %v327
      %v329 = vrot.slane %v319, %v328
      %v330 = vmul.f32 %v325, %v307
      %v331 = vmul.f32 %v329, %v309
      %s332 = scalar_lea.vmem %s1, 8
      %v333 = vld [vmem:[%s332] sm:$0xff]
      %v335 = vsel %vm236, %v333, 0
      %337 = vmatprep.subr.mxu0 0.0
      %338 = vmatpush1.msra.mxu0 0.0
      %339 = vmatprep.subr.mxu0 0.0
      %340 = vmatpush1.msra.mxu0 0.0
      %341 = vmatprep.subr.mxu0 0.0
      %342 = vmatpush1.msra.mxu0 0.0
      %343 = vmatprep.subr.mxu0 0.0
      %344 = vmatpush1.msra.mxu0 0.0
      %345 = vmatprep.subr.mxu0 0.0
      %346 = vmatpush1.msra.mxu0 0.0
      %347 = vmatprep.subr.mxu0 0.0
      %348 = vmatpush1.msra.mxu0 0.0
      %349 = vmatprep.subr.mxu0 0.0
      %350 = vmatpush1.msra.mxu0 0.0
      %351 = vmatprep.subr.mxu0 0.0
      %352 = vmatpush1.msra.mxu0 0.0
      %353 = vmatprep.subr.mxu0 0.0
      %354 = vmatpush1.msra.mxu0 0.0
      %355 = vmatprep.subr.mxu0 0.0
      %356 = vmatpush1.msra.mxu0 0.0
      %357 = vmatprep.subr.mxu0 0.0
      %358 = vmatpush1.msra.mxu0 0.0
      %359 = vmatprep.subr.mxu0 0.0
      %360 = vmatpush1.msra.mxu0 0.0
      %361 = vmatprep.subr.mxu0 0.0
      %362 = vmatpush1.msra.mxu0 0.0
      %363 = vmatprep.subr.mxu0 0.0
      %364 = vmatpush1.msra.mxu0 0.0
      %365 = vmatprep.subr.mxu0 0.0
      %366 = vmatpush1.msra.mxu0 0.0
      %367 = vmatprep.subr.mxu0 %v233
      %368 = vmatpush1.msra.mxu0 %v232
      %369 = vmatprep.subr.mxu0 0.0
      %370 = vmatpush2.msra.mxu0 0.0
      %371 = vmatprep.subr.mxu0 0.0
      %372 = vmatpush2.msra.mxu0 0.0
      %373 = vmatprep.subr.mxu0 0.0
      %374 = vmatpush2.msra.mxu0 0.0
      %375 = vmatprep.subr.mxu0 0.0
      %376 = vmatpush2.msra.mxu0 0.0
      %377 = vmatprep.subr.mxu0 0.0
      %378 = vmatpush2.msra.mxu0 0.0
      %379 = vmatprep.subr.mxu0 0.0
      %380 = vmatpush2.msra.mxu0 0.0
      %381 = vmatprep.subr.mxu0 0.0
      %382 = vmatpush2.msra.mxu0 0.0
      %383 = vmatprep.subr.mxu0 0.0
      %384 = vmatpush2.msra.mxu0 0.0
      %385 = vmatprep.subr.mxu0 0.0
      %386 = vmatpush2.msra.mxu0 0.0
      %387 = vmatprep.subr.mxu0 0.0
      %388 = vmatpush2.msra.mxu0 0.0
      %389 = vmatprep.subr.mxu0 0.0
      %390 = vmatpush2.msra.mxu0 0.0
      %391 = vmatprep.subr.mxu0 0.0
      %392 = vmatpush2.msra.mxu0 0.0
      %393 = vmatprep.subr.mxu0 0.0
      %394 = vmatpush2.msra.mxu0 0.0
      %395 = vmatprep.subr.mxu0 0.0
      %396 = vmatpush2.msra.mxu0 0.0
      %397 = vmatprep.subr.mxu0 0.0
      %398 = vmatpush2.msra.mxu0 0.0
      %399 = vmatprep.subr.mxu0 0.0
      %400 = vmatpush2.msra.mxu0 0.0
      %401 = vmatprep.mubr.f32.mxu0 0.0
      %402 = vmatmul.mubr.f32.gmra.mxu0 %v335
      %v403 = vpop.f32.mrf.mxu0
      %v404 = vadd.f32 0.0, %v403
      %v405 = vpop.f32.mrf.mxu0
      %v406 = vadd.f32 0.0, %v405
      %407 = vdwg.mxu0
      %v408 = vlaneseq
      %v409 = vshrl.u32 %v408, 7
      %v410 = vsub.s32 1, %v409
      %v411 = vrot.slane %v234, %v410
      %v412 = vlaneseq
      %v413 = vshrl.u32 %v412, 7
      %v414 = vsub.s32 5, %v413
      %v415 = vrot.slane %v234, %v414
      %v418 = vlaneseq
      %v419 = vshrl.u32 %v418, 7
      %v420 = vsub.s32 1, %v419
      %v421 = vrot.slane %v411, %v420
      %v422 = vlaneseq
      %v423 = vshrl.u32 %v422, 7
      %v424 = vsub.s32 1, %v423
      %v425 = vrot.slane %v415, %v424
      %v426 = vmul.f32 %v421, %v404
      %v427 = vmul.f32 %v425, %v406
      %v428 = vadd.f32 %v330, %v426
      %v429 = vadd.f32 %v331, %v427
      %s430 = scalar_lea.vmem %s1, 16
      %v431 = vld [vmem:[%s430] sm:$0xff]
      %v433 = vsel %vm236, %v431, 0
      %435 = vmatprep.subr.mxu0 0.0
      %436 = vmatpush1.msra.mxu0 0.0
      %437 = vmatprep.subr.mxu0 0.0
      %438 = vmatpush1.msra.mxu0 0.0
      %439 = vmatprep.subr.mxu0 0.0
      %440 = vmatpush1.msra.mxu0 0.0
      %441 = vmatprep.subr.mxu0 0.0
      %442 = vmatpush1.msra.mxu0 0.0
      %443 = vmatprep.subr.mxu0 0.0
      %444 = vmatpush1.msra.mxu0 0.0
      %445 = vmatprep.subr.mxu0 0.0
      %446 = vmatpush1.msra.mxu0 0.0
      %447 = vmatprep.subr.mxu0 0.0
      %448 = vmatpush1.msra.mxu0 0.0
      %449 = vmatprep.subr.mxu0 0.0
      %450 = vmatpush1.msra.mxu0 0.0
      %451 = vmatprep.subr.mxu0 0.0
      %452 = vmatpush1.msra.mxu0 0.0
      %453 = vmatprep.subr.mxu0 0.0
      %454 = vmatpush1.msra.mxu0 0.0
      %455 = vmatprep.subr.mxu0 0.0
      %456 = vmatpush1.msra.mxu0 0.0
      %457 = vmatprep.subr.mxu0 0.0
      %458 = vmatpush1.msra.mxu0 0.0
      %459 = vmatprep.subr.mxu0 0.0
      %460 = vmatpush1.msra.mxu0 0.0
      %461 = vmatprep.subr.mxu0 0.0
      %462 = vmatpush1.msra.mxu0 0.0
      %463 = vmatprep.subr.mxu0 0.0
      %464 = vmatpush1.msra.mxu0 0.0
      %465 = vmatprep.subr.mxu0 %v233
      %466 = vmatpush1.msra.mxu0 %v232
      %467 = vmatprep.subr.mxu0 0.0
      %468 = vmatpush2.msra.mxu0 0.0
      %469 = vmatprep.subr.mxu0 0.0
      %470 = vmatpush2.msra.mxu0 0.0
      %471 = vmatprep.subr.mxu0 0.0
      %472 = vmatpush2.msra.mxu0 0.0
      %473 = vmatprep.subr.mxu0 0.0
      %474 = vmatpush2.msra.mxu0 0.0
      %475 = vmatprep.subr.mxu0 0.0
      %476 = vmatpush2.msra.mxu0 0.0
      %477 = vmatprep.subr.mxu0 0.0
      %478 = vmatpush2.msra.mxu0 0.0
      %479 = vmatprep.subr.mxu0 0.0
      %480 = vmatpush2.msra.mxu0 0.0
      %481 = vmatprep.subr.mxu0 0.0
      %482 = vmatpush2.msra.mxu0 0.0
      %483 = vmatprep.subr.mxu0 0.0
      %484 = vmatpush2.msra.mxu0 0.0
      %485 = vmatprep.subr.mxu0 0.0
      %486 = vmatpush2.msra.mxu0 0.0
      %487 = vmatprep.subr.mxu0 0.0
      %488 = vmatpush2.msra.mxu0 0.0
      %489 = vmatprep.subr.mxu0 0.0
      %490 = vmatpush2.msra.mxu0 0.0
      %491 = vmatprep.subr.mxu0 0.0
      %492 = vmatpush2.msra.mxu0 0.0
      %493 = vmatprep.subr.mxu0 0.0
      %494 = vmatpush2.msra.mxu0 0.0
      %495 = vmatprep.subr.mxu0 0.0
      %496 = vmatpush2.msra.mxu0 0.0
      %497 = vmatprep.subr.mxu0 0.0
      %498 = vmatpush2.msra.mxu0 0.0
      %499 = vmatprep.mubr.f32.mxu0 0.0
      %500 = vmatmul.mubr.f32.gmra.mxu0 %v433
      %v501 = vpop.f32.mrf.mxu0
      %v502 = vadd.f32 0.0, %v501
      %v503 = vpop.f32.mrf.mxu0
      %v504 = vadd.f32 0.0, %v503
      %505 = vdwg.mxu0
      %v506 = vlaneseq
      %v507 = vshrl.u32 %v506, 7
      %v508 = vsub.s32 2, %v507
      %v509 = vrot.slane %v234, %v508
      %v510 = vlaneseq
      %v511 = vshrl.u32 %v510, 7
      %v512 = vsub.s32 6, %v511
      %v513 = vrot.slane %v234, %v512
      %v516 = vlaneseq
      %v517 = vshrl.u32 %v516, 7
      %v518 = vsub.s32 2, %v517
      %v519 = vrot.slane %v509, %v518
      %v520 = vlaneseq
      %v521 = vshrl.u32 %v520, 7
      %v522 = vsub.s32 2, %v521
      %v523 = vrot.slane %v513, %v522
      %v524 = vmul.f32 %v519, %v502
      %v525 = vmul.f32 %v523, %v504
      %v526 = vadd.f32 %v428, %v524
      %v527 = vadd.f32 %v429, %v525
      %s528 = scalar_lea.vmem %s1, 24
      %v529 = vld [vmem:[%s528] sm:$0xff]
      %v531 = vsel %vm236, %v529, 0
      %533 = vmatprep.subr.mxu0 0.0
      %534 = vmatpush1.msra.mxu0 0.0
      %535 = vmatprep.subr.mxu0 0.0
      %536 = vmatpush1.msra.mxu0 0.0
      %537 = vmatprep.subr.mxu0 0.0
      %538 = vmatpush1.msra.mxu0 0.0
      %539 = vmatprep.subr.mxu0 0.0
      %540 = vmatpush1.msra.mxu0 0.0
      %541 = vmatprep.subr.mxu0 0.0
      %542 = vmatpush1.msra.mxu0 0.0
      %543 = vmatprep.subr.mxu0 0.0
      %544 = vmatpush1.msra.mxu0 0.0
      %545 = vmatprep.subr.mxu0 0.0
      %546 = vmatpush1.msra.mxu0 0.0
      %547 = vmatprep.subr.mxu0 0.0
      %548 = vmatpush1.msra.mxu0 0.0
      %549 = vmatprep.subr.mxu0 0.0
      %550 = vmatpush1.msra.mxu0 0.0
      %551 = vmatprep.subr.mxu0 0.0
      %552 = vmatpush1.msra.mxu0 0.0
      %553 = vmatprep.subr.mxu0 0.0
      %554 = vmatpush1.msra.mxu0 0.0
      %555 = vmatprep.subr.mxu0 0.0
      %556 = vmatpush1.msra.mxu0 0.0
      %557 = vmatprep.subr.mxu0 0.0
      %558 = vmatpush1.msra.mxu0 0.0
      %559 = vmatprep.subr.mxu0 0.0
      %560 = vmatpush1.msra.mxu0 0.0
      %561 = vmatprep.subr.mxu0 0.0
      %562 = vmatpush1.msra.mxu0 0.0
      %563 = vmatprep.subr.mxu0 %v233
      %564 = vmatpush1.msra.mxu0 %v232
      %565 = vmatprep.subr.mxu0 0.0
      %566 = vmatpush2.msra.mxu0 0.0
      %567 = vmatprep.subr.mxu0 0.0
      %568 = vmatpush2.msra.mxu0 0.0
      %569 = vmatprep.subr.mxu0 0.0
      %570 = vmatpush2.msra.mxu0 0.0
      %571 = vmatprep.subr.mxu0 0.0
      %572 = vmatpush2.msra.mxu0 0.0
      %573 = vmatprep.subr.mxu0 0.0
      %574 = vmatpush2.msra.mxu0 0.0
      %575 = vmatprep.subr.mxu0 0.0
      %576 = vmatpush2.msra.mxu0 0.0
      %577 = vmatprep.subr.mxu0 0.0
      %578 = vmatpush2.msra.mxu0 0.0
      %579 = vmatprep.subr.mxu0 0.0
      %580 = vmatpush2.msra.mxu0 0.0
      %581 = vmatprep.subr.mxu0 0.0
      %582 = vmatpush2.msra.mxu0 0.0
      %583 = vmatprep.subr.mxu0 0.0
      %584 = vmatpush2.msra.mxu0 0.0
      %585 = vmatprep.subr.mxu0 0.0
      %586 = vmatpush2.msra.mxu0 0.0
      %587 = vmatprep.subr.mxu0 0.0
      %588 = vmatpush2.msra.mxu0 0.0
      %589 = vmatprep.subr.mxu0 0.0
      %590 = vmatpush2.msra.mxu0 0.0
      %591 = vmatprep.subr.mxu0 0.0
      %592 = vmatpush2.msra.mxu0 0.0
      %593 = vmatprep.subr.mxu0 0.0
      %594 = vmatpush2.msra.mxu0 0.0
      %595 = vmatprep.subr.mxu0 0.0
      %596 = vmatpush2.msra.mxu0 0.0
      %597 = vmatprep.mubr.f32.mxu0 0.0
      %598 = vmatmul.mubr.f32.gmra.mxu0 %v531
      %v599 = vpop.f32.mrf.mxu0
      %v600 = vadd.f32 0.0, %v599
      %v601 = vpop.f32.mrf.mxu0
      %v602 = vadd.f32 0.0, %v601
      %603 = vdwg.mxu0
      %v604 = vlaneseq
      %v605 = vshrl.u32 %v604, 7
      %v606 = vsub.s32 3, %v605
      %v607 = vrot.slane %v234, %v606
      %v608 = vlaneseq
      %v609 = vshrl.u32 %v608, 7
      %v610 = vsub.s32 7, %v609
      %v611 = vrot.slane %v234, %v610
      %v614 = vlaneseq
      %v615 = vshrl.u32 %v614, 7
      %v616 = vsub.s32 3, %v615
      %v617 = vrot.slane %v607, %v616
      %v618 = vlaneseq
      %v619 = vshrl.u32 %v618, 7
      %v620 = vsub.s32 3, %v619
      %v621 = vrot.slane %v611, %v620
      %v622 = vmul.f32 %v617, %v600
      %v623 = vmul.f32 %v621, %v602
      %v624 = vadd.f32 %v526, %v622
      %v625 = vadd.f32 %v527, %v623
      %626 = vst [vmem:[%s230] sm:$0xff] %v624
      %627 = vst [vmem:[%s230 + $0x8] sm:$0xff] %v625
      %s628 = smul.u32 2, %s18
      %p629 = scmp.lt.s32.totalorder %s19, 1
      %s630 = scalar_select %p629, %s19, 1
      %p631 = scmp.lt.s32.totalorder %s628, 1
      %s632 = scalar_select %p631, %s628, 1
      %s633 = smul.addr %s630, 2
      %s634 = sadd.s32 %s632, %s633
      %s635 = smul.addr %s634, 8
      %s636 = scalar_lea.vmem %s3, %s635
      // Predicated region
      $region33: #{deformable_matmul3.1} parent=31 // pred_check
        %p637 = pneg %p121
      $region34: #{deformable_matmul3.1} parent=31 // pred_check_branch
        %639 = sbr.rel (%p637) target = $region36
      $region35: #{deformable_matmul3.1} parent=31 // pred_region
        %s640 = smul.u32 2, %s18
      $region36: #{deformable_matmul3.1} parent=31 // pred_fallthru
        _
    $region32: #{deformable_matmul3.1} parent=5 // pred_fallthru
      _
    %p641 = scmp.le.s32.totalorder 2, %s9
    // Predicated region
    $region37: #{deformable_matmul3.1} parent=5 // pred_check
      %p642 = pneg %p641
    $region38: #{deformable_matmul3.1} parent=5 // pred_check_branch
      %644 = sbr.rel (%p642) target = $region40
    $region39: #{deformable_matmul3.1} parent=5 // pred_region
      %s645 = ssub.s32 %s9, 2
      // Predicated region
      $region41: #{deformable_matmul3.1} parent=39 // pred_check
        %p646 = pneg %p127
      $region42: #{deformable_matmul3.1} parent=39 // pred_check_branch
        %648 = sbr.rel (%p646) target = $region44
      $region43: #{deformable_matmul3.1} parent=39 // pred_region
        %s649 = smul.u32 2, %s20
        %p650 = scmp.lt.s32.totalorder %s21, 1
        %s651 = scalar_select %p650, %s21, 1
        %p652 = scmp.lt.s32.totalorder %s649, 1
        %s653 = scalar_select %p652, %s649, 1
        %s654 = smul.addr %s651, 2
        %s655 = sadd.s32 %s653, %s654
        %s656 = smul.addr %s655, 8
        %s657 = scalar_lea.vmem %s3, %s656
      $region44: #{deformable_matmul3.1} parent=39 // pred_fallthru
        _
    $region40: #{deformable_matmul3.1} parent=5 // pred_fallthru
      _
  $region6: #{deformable_matmul3.1} parent=0 // loop_footer
    %s13 = sadd.s32 1, %s9
  $region7: #{deformable_matmul3.1} parent=0 // loop_footer_branch
    %8 = sbr.rel target = $region3
  $region8: #{deformable_matmul3.1} parent=0 // loop_exit
    _

</llo_original>
